<compile_context>
chip_gen: v7x
topology: tpu7x:2x2x1
jax: 0.10.0
libtpu: 0.0.40
codegen_flags: <defaults>
</compile_context>

<pallas_src>
import jax
import jax.numpy as jnp
from jax.experimental import pallas as pl
from jax.experimental.pallas import tpu as pltpu


def _round_up(a, b):
    return (a + b - 1) // b * b


def _cdiv(a, b):
    return -(-a // b)


# ---------------------------------------------------------------------------
# Kernels
# ---------------------------------------------------------------------------
def _mlp_kernel_resident(x_ref, w1t_ref, w2t_ref, o_ref):
    # x_ref: (tm, Hp); w1t_ref: (Hp, Fp) resident; w2t_ref: (Fp, Hp) resident.
    h = jnp.dot(x_ref[...], w1t_ref[...], preferred_element_type=jnp.float32)
    h = h * jax.nn.sigmoid(h)                       # SiLU in f32 (EUP slot)
    o_ref[...] = jnp.dot(h.astype(w2t_ref.dtype), w2t_ref[...],
                         preferred_element_type=jnp.float32).astype(o_ref.dtype)


def _mlp_kernel_tiled(x_ref, w1t_ref, w2t_ref, o_ref, acc_ref):
    # x_ref: (tm, Hp); w1t_ref: (Hp, tk); w2t_ref: (tk, Hp); o_ref: (tm, Hp)
    k = pl.program_id(1)

    @pl.when(k == 0)
    def _init():
        acc_ref[...] = jnp.zeros_like(acc_ref)

    h = jnp.dot(x_ref[...], w1t_ref[...], preferred_element_type=jnp.float32)
    h = h * jax.nn.sigmoid(h)
    acc_ref[...] += jnp.dot(h.astype(w2t_ref.dtype), w2t_ref[...],
                            preferred_element_type=jnp.float32)

    @pl.when(k == pl.num_programs(1) - 1)
    def _finalize():
        o_ref[...] = acc_ref[...].astype(o_ref.dtype)


# ---------------------------------------------------------------------------
# Device-aware budgets
# ---------------------------------------------------------------------------
def _device_params():
    """Returns (vmem_bytes_per_core, num_tensorcores, mxu_align)."""
    vmem_bytes = 64 * 1024 * 1024          # conservative fallback (v7x per-TC)
    try:
        v = int(pltpu.get_tpu_info().vmem_capacity_bytes)
        if 16 * 1024 * 1024 <= v <= 128 * 1024 * 1024:
            vmem_bytes = v
    except Exception:
        pass
    num_tc = 1
    mxu_align = 256                         # v6e/v7x 256x256 MXU
    try:
        kind = jax.devices()[0].device_kind.lower()
        if "v7" in kind:
            num_tc = 2
            vmem_bytes = min(vmem_bytes, 64 * 1024 * 1024)
        elif "v4" in kind or "v5p" in kind:
            num_tc = 2                      # megacore
        if ("v5" in kind and "p" not in kind) or "v4" in kind or "v3" in kind:
            mxu_align = 128                 # 128x128 MXU parts
    except Exception:
        pass
    return vmem_bytes, num_tc, mxu_align


# ---------------------------------------------------------------------------
# Wrapper
# ---------------------------------------------------------------------------
def decoder_mlp(x, w1, w2, *, compute_dtype=None, tm=None, tk=None,
                use_pallas=None, force_tiled=False):
    """DecoderMLP forward: dropout(linear2(silu(linear1(x)))) in eval mode.

    x:  (..., H)   activations
    w1: (4H, H)    PyTorch nn.Linear weight layout (out_features, in_features)
    w2: (H, 4H)
    compute_dtype: matmul input dtype (default = x.dtype). Pass jnp.bfloat16 to
        use the fast bf16 MXU path (f32 accumulation is kept either way).
    """
    orig_shape = x.shape
    H = orig_shape[-1]
    F = 4 * H
    assert w1.shape == (F, H) and w2.shape == (H, F)

    out_dtype = x.dtype
    if compute_dtype is None:
        compute_dtype = out_dtype
    compute_dtype = jnp.dtype(compute_dtype)
    c_isz = compute_dtype.itemsize
    o_isz = jnp.dtype(out_dtype).itemsize

    x2d = x.reshape(-1, H)
    M = x2d.shape[0]

    # Tiny problems: pallas_call launch + DMA setup dominates -> let XLA fuse.
    if use_pallas is None:
        use_pallas = (M * F) >= (512 * 512)
    if not use_pallas:
        xc = x2d.astype(compute_dtype)
        h = jnp.dot(xc, jnp.asarray(w1, compute_dtype).T,
                    preferred_element_type=jnp.float32)
        h = h * jax.nn.sigmoid(h)
        y = jnp.dot(h.astype(compute_dtype), jnp.asarray(w2, compute_dtype).T,
                    preferred_element_type=jnp.float32)
        return y.astype(out_dtype).reshape(orig_shape)

    vmem_bytes, num_tc, mxu_align = _device_params()
    ws_budget = int(vmem_bytes * 0.55)                       # working-set budget
    vmem_limit = min(int(vmem_bytes * 0.75), 100 * 1024 * 1024)

    Hp = _round_up(H, 128)                                   # lane-dense hidden dim
    Mp8 = _round_up(max(M, 1), 8)

    # ---- weights-resident fast path check ----------------------------------
    Fp_res = _round_up(F, 128)
    # Budget 2 buffers per weight slab (worst case for the pipeline emitter).
    w_bytes_res = 2 * 2 * Hp * Fp_res * c_isz
    per_tm_res = 2 * Hp * c_isz + 2 * Hp * o_isz + Fp_res * (4 + c_isz)
    tm_cap_res = (max(0, ws_budget - w_bytes_res) // per_tm_res) // 8 * 8
    resident = (not force_tiled) and tm_cap_res >= max(8, min(Mp8, 128))

    # ---- row tile -----------------------------------------------------------
    if tm is None:
        if resident:
            tm = min(tm_cap_res, 512, Mp8)
        else:
            row_budget = int(vmem_bytes * 0.25)
            per_row = Hp * (2 * c_isz + 2 * o_isz + 4)       # x/out dbuf + f32 acc
            tm = min(512, max(8, (row_budget // per_row) // 8 * 8), Mp8)
    tm = max(8, _round_up(int(tm), 8))
    if num_tc >= 2 and M > 8:
        # Guarantee >= 2 row tiles so the "parallel" axis shards across cores.
        tm = min(tm, max(8, (Mp8 // 2) // 8 * 8))
    n_i = _cdiv(M, tm)
    tm = _round_up(_cdiv(M, n_i), 8)                         # minimize row overshoot
    Mp = n_i * tm

    cast_needed = compute_dtype != jnp.dtype(x.dtype)
    xc = x2d.astype(compute_dtype) if cast_needed else x2d
    w1t = jnp.asarray(w1, compute_dtype).T                   # (H, 4H), one-time
    w2t = jnp.asarray(w2, compute_dtype).T                   # (4H, H), one-time

    if resident:
        Fp = Fp_res
        xp = jnp.pad(xc, ((0, Mp - M), (0, Hp - H)))
        w1tp = jnp.pad(w1t, ((0, Hp - H), (0, Fp - F)))
        w2tp = jnp.pad(w2t, ((0, Fp - F), (0, Hp - H)))

        cost = pl.CostEstimate(
            flops=4 * Mp * Hp * Fp,
            transcendentals=Mp * Fp,
            bytes_accessed=Mp * Hp * c_isz + Mp * Hp * o_isz + 2 * Hp * Fp * c_isz,
        )
        out = pl.pallas_call(
            _mlp_kernel_resident,
            out_shape=jax.ShapeDtypeStruct((Mp, Hp), out_dtype),
            grid_spec=pltpu.PrefetchScalarGridSpec(
                num_scalar_prefetch=0,
                grid=(Mp // tm,),
                in_specs=[
                    pl.BlockSpec((tm, Hp), lambda i: (i, 0)),   # x row tile
                    pl.BlockSpec((Hp, Fp), lambda i: (0, 0)),   # W1^T (resident)
                    pl.BlockSpec((Fp, Hp), lambda i: (0, 0)),   # W2^T (resident)
                ],
                out_specs=pl.BlockSpec((tm, Hp), lambda i: (i, 0)),
            ),
            compiler_params=pltpu.CompilerParams(
                dimension_semantics=("parallel",),
                vmem_limit_bytes=vmem_limit,
            ),
            cost_estimate=cost,
        )(xp, w1tp, w2tp)
        return out[:M, :H].astype(out_dtype).reshape(orig_shape)

    # ---- k-tiled accumulator path (weights too large to be resident) --------
    if tk is None:
        fixed = 2 * tm * Hp * (c_isz + o_isz) + tm * Hp * 4      # x/out dbuf + acc
        per_tk = 4 * Hp * c_isz + tm * (4 + c_isz)               # weight slabs x2buf + h + cast
        avail = max(ws_budget - fixed, mxu_align * per_tk)
        tk = (avail // per_tk) // mxu_align * mxu_align
        tk = int(max(mxu_align, min(2048, tk)))
        # Re-derive (n_k, tk) minimizing padded Fp under the budgeted tk.
        nk_max = _cdiv(F, mxu_align)
        nk_iter = _cdiv(F, tk)
        candidates = []
        while nk_iter <= nk_max and len(candidates) < 8:
            tkc = _round_up(_cdiv(F, nk_iter), mxu_align)
            if tkc <= tk:
                candidates.append((nk_iter * tkc, tkc, nk_iter))
            nk_iter += 1
        Fp, tk, n_k = min(candidates)
    else:
        tk = _round_up(int(tk), 128)
        n_k = _cdiv(F, tk)
        Fp = n_k * tk

    xp = jnp.pad(xc, ((0, Mp - M), (0, Hp - H)))
    w1tp = jnp.pad(w1t, ((0, Hp - H), (0, Fp - F)))
    w2tp = jnp.pad(w2t, ((0, Fp - F), (0, Hp - H)))

    grid = (Mp // tm, Fp // tk)
    cost = pl.CostEstimate(
        flops=4 * Mp * Hp * Fp,
        transcendentals=Mp * Fp,
        # Weights are re-streamed once per row tile.
        bytes_accessed=Mp * Hp * c_isz + Mp * Hp * o_isz
                       + (Mp // tm) * 2 * Hp * Fp * c_isz,
    )
    out = pl.pallas_call(
        _mlp_kernel_tiled,
        out_shape=jax.ShapeDtypeStruct((Mp, Hp), out_dtype),
        grid_spec=pltpu.PrefetchScalarGridSpec(
            num_scalar_prefetch=0,
            grid=grid,
            in_specs=[
                pl.BlockSpec((tm, Hp), lambda i, k: (i, 0)),   # x row tile
                pl.BlockSpec((Hp, tk), lambda i, k: (0, k)),   # W1^T column slab
                pl.BlockSpec((tk, Hp), lambda i, k: (k, 0)),   # W2^T row slab
            ],
            out_specs=pl.BlockSpec((tm, Hp), lambda i, k: (i, 0)),
            scratch_shapes=[pltpu.VMEM((tm, Hp), jnp.float32)],
        ),
        compiler_params=pltpu.CompilerParams(
            dimension_semantics=("parallel", "arbitrary"),
            vmem_limit_bytes=vmem_limit,
        ),
        cost_estimate=cost,
    )(xp, w1tp, w2tp)
    return out[:M, :H].astype(out_dtype).reshape(orig_shape)


def _reference(x, w1, w2):
    h = x.reshape(-1, x.shape[-1]) @ w1.T
    h = h * jax.nn.sigmoid(h)
    return (h @ w2.T).reshape(x.shape)


if __name__ == "__main__":
    # ModelArgs: decoder_audio_hidden_dim = 32, mlp_dropout (identity in eval).
    B, S, H = 2, 8, 32
    key = jax.random.PRNGKey(0)
    kx, k1, k2 = jax.random.split(key, 3)
    x = jax.random.normal(kx, (B, S, H), dtype=jnp.float32)
    # nn.Linear weight shapes: (out_features, in_features), no bias.
    w1 = jax.random.normal(k1, (4 * H, H), dtype=jnp.float32) * (1.0 / H ** 0.5)
    w2 = jax.random.normal(k2, (H, 4 * H), dtype=jnp.float32) * (1.0 / (4 * H) ** 0.5)
    y_ref = _reference(x, w1, w2)

    # 1) weights-resident fast path (the actual H=32 use case), exact f32.
    y = jax.block_until_ready(decoder_mlp(x, w1, w2, use_pallas=True))
    assert y.shape == (B, S, H)
    assert jnp.allclose(y, y_ref, atol=1e-4, rtol=1e-4), "mismatch (resident path)"

    # 2) k-tiled accumulator path with non-aligned row / hidden / 4H dims.
    B2, S2, H2 = 2, 10, 48
    kx2, k3, k4 = jax.random.split(jax.random.PRNGKey(1), 3)
    x2 = jax.random.normal(kx2, (B2, S2, H2), dtype=jnp.float32)
    w1b = jax.random.normal(k3, (4 * H2, H2), dtype=jnp.float32) * (1.0 / H2 ** 0.5)
    w2b = jax.random.normal(k4, (H2, 4 * H2), dtype=jnp.float32) * (1.0 / (4 * H2) ** 0.5)
    y2 = jax.block_until_ready(
        decoder_mlp(x2, w1b, w2b, use_pallas=True, force_tiled=True, tk=128))
    y2_ref = _reference(x2, w1b, w2b)
    assert jnp.allclose(y2, y2_ref, atol=1e-4, rtol=1e-4), "mismatch (tiled path)"

    # 3) bf16 MXU path: f32 inputs, bf16 matmul operands, f32 accumulation.
    y3 = jax.block_until_ready(
        decoder_mlp(x, w1, w2, use_pallas=True, compute_dtype=jnp.bfloat16))
    assert y3.shape == (B, S, H)
    assert jnp.allclose(y3, y_ref, atol=8e-2, rtol=8e-2), "mismatch (bf16 path)"

    print("KERNEL_OK")
</pallas_src>

<mosaic_0001>
module attributes {stable_mosaic.version = 11 : i64} {
  func.func @_mlp_kernel_resident(%arg0: i32, %arg1: memref<16x128xf32, #tpu.memory_space<vmem>>, %arg2: memref<128x128xf32, #tpu.memory_space<vmem>>, %arg3: memref<128x128xf32, #tpu.memory_space<vmem>>, %arg4: memref<16x128xf32, #tpu.memory_space<vmem>>) attributes {dimension_semantics = [#tpu.dimension_semantics<parallel>], iteration_bounds = array<i64: 1>, scalar_prefetch = 0 : i64, scratch_operands = 0 : i64, tpu.core_type = #tpu.core_type<tc>, window_params = [{transform_indices = @transform_0, window_bounds = array<i64: 16, 128>}, {pipeline_mode = #tpu.pipeline_mode<synchronous>, transform_indices = @transform_1, window_bounds = array<i64: 128, 128>}, {pipeline_mode = #tpu.pipeline_mode<synchronous>, transform_indices = @transform_2, window_bounds = array<i64: 128, 128>}, {transform_indices = @transform_3, window_bounds = array<i64: 16, 128>}]} {
    %c0 = arith.constant 0 : index
    %c0_0 = arith.constant 0 : index
    %0 = vector.load %arg1[%c0, %c0_0] : memref<16x128xf32, #tpu.memory_space<vmem>>, vector<16x128xf32>
    %c0_1 = arith.constant 0 : index
    %c0_2 = arith.constant 0 : index
    %1 = vector.load %arg2[%c0_1, %c0_2] : memref<128x128xf32, #tpu.memory_space<vmem>>, vector<128x128xf32>
    %cst = arith.constant dense<0.000000e+00> : vector<16x128xf32>
    %2 = tpu.matmul %0, %1, %cst {dimension_numbers = #tpu.dot_dimension_numbers<[1], [0], [0], [1], [0, 0, 1, 1], [], []>} : vector<16x128xf32>, vector<128x128xf32>, vector<16x128xf32> -> vector<16x128xf32>
    %3 = arith.negf %2 : vector<16x128xf32>
    %4 = math.exp %3 : vector<16x128xf32>
    %cst_3 = arith.constant 1.000000e+00 : f32
    %5 = vector.broadcast %cst_3 : f32 to vector<16x128xf32>
    %6 = arith.addf %5, %4 : vector<16x128xf32>
    %7 = arith.divf %5, %6 : vector<16x128xf32>
    %8 = arith.mulf %2, %7 : vector<16x128xf32>
    %c0_4 = arith.constant 0 : index
    %c0_5 = arith.constant 0 : index
    %9 = vector.load %arg3[%c0_4, %c0_5] : memref<128x128xf32, #tpu.memory_space<vmem>>, vector<128x128xf32>
    %cst_6 = arith.constant dense<0.000000e+00> : vector<16x128xf32>
    %10 = tpu.matmul %8, %9, %cst_6 {dimension_numbers = #tpu.dot_dimension_numbers<[1], [0], [0], [1], [0, 0, 1, 1], [], []>} : vector<16x128xf32>, vector<128x128xf32>, vector<16x128xf32> -> vector<16x128xf32>
    %c0_7 = arith.constant 0 : index
    %c0_8 = arith.constant 0 : index
    %11 = vector.load %arg4[%c0_7, %c0_8] : memref<16x128xf32, #tpu.memory_space<vmem>>, vector<16x128xf32>
    tpu.vector_store %arg4[%c0_7, %c0_8], %10 {strides = array<i32>} : memref<16x128xf32, #tpu.memory_space<vmem>>, vector<16x128xf32>,
    return
  }
  func.func @transform_0(%arg0: i32) -> (i32, i32) {
    %c0_i32 = arith.constant 0 : i32
    %c0_i32_0 = arith.constant 0 : i32
    return %arg0, %c0_i32 : i32, i32
  }
  func.func @transform_1(%arg0: i32) -> (i32, i32) {
    %c0_i32 = arith.constant 0 : i32
    %c0_i32_0 = arith.constant 0 : i32
    %c0_i32_1 = arith.constant 0 : i32
    return %c0_i32, %c0_i32_0 : i32, i32
  }
  func.func @transform_2(%arg0: i32) -> (i32, i32) {
    %c0_i32 = arith.constant 0 : i32
    %c0_i32_0 = arith.constant 0 : i32
    %c0_i32_1 = arith.constant 0 : i32
    return %c0_i32, %c0_i32_0 : i32, i32
  }
  func.func @transform_3(%arg0: i32) -> (i32, i32) {
    %c0_i32 = arith.constant 0 : i32
    %c0_i32_0 = arith.constant 0 : i32
    return %arg0, %c0_i32 : i32, i32
  }
}

</mosaic_0001>

<llo_original>
// kernel: tpu_custom_call.1
$region0: #{tpu_custom_call.1}
  #allocation0 [shape = 'u32[]', space=smem, size = 0x4, offset = 0x4, fixed_abs, tag = 'smem constant byte address 0x4 - core index']
  #allocation1 [shape = 'u32[144,128]{1,0:T(1,128)}', space=vmem, size = 0x12000, scoped, tag = 'internal scratch']
  %s0 = inlined_call_operand.hbm [shape: f32[16,128], index: 0, kind: input, shape index: {}]
  %s1 = inlined_call_operand.hbm [shape: f32[128,128], index: 1, kind: input, shape index: {}]
  %s2 = inlined_call_operand.hbm [shape: f32[128,128], index: 2, kind: input, shape index: {}]
  %s3 = inlined_call_operand.hbm [shape: f32[16,128], index: 3, kind: output, shape index: {}]
  %s4 = sld [smem:[#allocation0]]
  $region34: #{tpu_custom_call.1} parent=0
    _
  %s6 = ssub.s32 1, %s4
  %s7 = scalar_select 0, %s6, %s4
  $region1: #{tpu_custom_call.1} parent=0
    #allocation2 [shape = 'u8[8192]{0}', space=vmem, size = 0x2000, scoped, tag = 'input window, operand 0, single buffered']
    #allocation3 [shape = 's32[1]{0}', space=sflag, size = 0x4, scoped, tag = 'scoped memory for tpu_custom_call.1']
    #allocation4 [shape = 's32[1]{0}', space=sflag, size = 0x4, scoped, tag = 'scoped memory for tpu_custom_call.1']
    #allocation5 [shape = 'u8[65536]{0}', space=vmem, size = 0x10000, scoped, tag = 'input window, operand 1, single buffered']
    #allocation6 [shape = 's32[1]{0}', space=sflag, size = 0x4, scoped, tag = 'scoped memory for tpu_custom_call.1']
    #allocation7 [shape = 'u8[65536]{0}', space=vmem, size = 0x10000, scoped, tag = 'input window, operand 2, single buffered']
    #allocation8 [shape = 'u8[8192]{0}', space=vmem, size = 0x2000, scoped, tag = 'output window, operand 0, single buffered']
    %8 = vsyncpa [#allocation3], 0
    %9 = vsyncpa [#allocation6], 0
    %10 = vsyncpa [#allocation4], 0
    // Predicated region
    $region2: #{tpu_custom_call.1} parent=1 // pred_check
      _
    $region3: #{tpu_custom_call.1} parent=1 // pred_check_branch
      %12 = sbr.rel (0) target = $region5
    $region4: #{tpu_custom_call.1} parent=1 // pred_region
      %s14 = ssub.s32 256, 256
      %15 = vsyncadd [#allocation3], %s14
      %s16 = sshll.u32 [#allocation2], 4
      %s17 = int_to_ptr.vmem [resolvable:$true] %s16
      %22 = dma.hbm_to_vmem [thread:$0]  %s0, 256, %s17, [#allocation3], 128, 128, 8
    $region5: #{tpu_custom_call.1} parent=1 // pred_fallthru
      _
    // Predicated region
    $region6: #{tpu_custom_call.1} parent=1 // pred_check
      _
    $region7: #{tpu_custom_call.1} parent=1 // pred_check_branch
      %24 = sbr.rel (0) target = $region9
    $region8: #{tpu_custom_call.1} parent=1 // pred_region
      %s26 = ssub.s32 2048, 2048
      %27 = vsyncadd [#allocation6], %s26
      %s28 = sshll.u32 [#allocation5], 4
      %s29 = int_to_ptr.vmem [resolvable:$true] %s28
      %34 = dma.hbm_to_vmem [thread:$0]  %s1, 2048, %s29, [#allocation6], 128, 128, 8
    $region9: #{tpu_custom_call.1} parent=1 // pred_fallthru
      _
    // Predicated region
    $region10: #{tpu_custom_call.1} parent=1 // pred_check
      _
    $region11: #{tpu_custom_call.1} parent=1 // pred_check_branch
      %36 = sbr.rel (0) target = $region13
    $region12: #{tpu_custom_call.1} parent=1 // pred_region
      %s38 = ssub.s32 2048, 2048
      %39 = vsyncadd [#allocation6], %s38
      %s40 = sshll.u32 [#allocation7], 4
      %s41 = int_to_ptr.vmem [resolvable:$true] %s40
      %46 = dma.hbm_to_vmem [thread:$0]  %s2, 2048, %s41, [#allocation6], 128, 128, 8
    $region13: #{tpu_custom_call.1} parent=1 // pred_fallthru
      _
    // Predicated region
    $region14: #{tpu_custom_call.1} parent=1 // pred_check
      _
    $region15: #{tpu_custom_call.1} parent=1 // pred_check_branch
      %48 = sbr.rel (0) target = $region17
    $region16: #{tpu_custom_call.1} parent=1 // pred_region
      %49 = dma.done [#allocation3], 256
    $region17: #{tpu_custom_call.1} parent=1 // pred_fallthru
      _
    // Predicated region
    $region18: #{tpu_custom_call.1} parent=1 // pred_check
      _
    $region19: #{tpu_custom_call.1} parent=1 // pred_check_branch
      %51 = sbr.rel (0) target = $region21
    $region20: #{tpu_custom_call.1} parent=1 // pred_region
      %52 = dma.done [#allocation6], 2048
    $region21: #{tpu_custom_call.1} parent=1 // pred_fallthru
      _
    // Predicated region
    $region22: #{tpu_custom_call.1} parent=1 // pred_check
      _
    $region23: #{tpu_custom_call.1} parent=1 // pred_check_branch
      %54 = sbr.rel (0) target = $region25
    $region24: #{tpu_custom_call.1} parent=1 // pred_region
      %55 = dma.done [#allocation6], 2048
    $region25: #{tpu_custom_call.1} parent=1 // pred_fallthru
      _
    %v56 = vld [vmem:[#allocation2] sm:$0xff]
    %v57 = vld [vmem:[#allocation2 + $0x8] sm:$0xff]
    %v58 = vld [vmem:[#allocation5] sm:$0xff]
    %v59 = vld [vmem:[#allocation5 + $0x8] sm:$0xff]
    %v60 = vld [vmem:[#allocation5 + $0x10] sm:$0xff]
    %v61 = vld [vmem:[#allocation5 + $0x18] sm:$0xff]
    %v62 = vld [vmem:[#allocation5 + $0x20] sm:$0xff]
    %v63 = vld [vmem:[#allocation5 + $0x28] sm:$0xff]
    %v64 = vld [vmem:[#allocation5 + $0x30] sm:$0xff]
    %v65 = vld [vmem:[#allocation5 + $0x38] sm:$0xff]
    %v66 = vld [vmem:[#allocation5 + $0x40] sm:$0xff]
    %v67 = vld [vmem:[#allocation5 + $0x48] sm:$0xff]
    %v68 = vld [vmem:[#allocation5 + $0x50] sm:$0xff]
    %v69 = vld [vmem:[#allocation5 + $0x58] sm:$0xff]
    %v70 = vld [vmem:[#allocation5 + $0x60] sm:$0xff]
    %v71 = vld [vmem:[#allocation5 + $0x68] sm:$0xff]
    %v72 = vld [vmem:[#allocation5 + $0x70] sm:$0xff]
    %v73 = vld [vmem:[#allocation5 + $0x78] sm:$0xff]
    %74 = vmatprep.subr.mxu0 0.0
    %75 = vmatpush1.msra.mxu0 %v58
    %76 = vmatprep.subr.mxu0 0.0
    %77 = vmatpush1.msra.mxu0 %v59
    %78 = vmatprep.subr.mxu0 0.0
    %79 = vmatpush1.msra.mxu0 %v60
    %80 = vmatprep.subr.mxu0 0.0
    %81 = vmatpush1.msra.mxu0 %v61
    %82 = vmatprep.subr.mxu0 0.0
    %83 = vmatpush1.msra.mxu0 %v62
    %84 = vmatprep.subr.mxu0 0.0
    %85 = vmatpush1.msra.mxu0 %v63
    %86 = vmatprep.subr.mxu0 0.0
    %87 = vmatpush1.msra.mxu0 %v64
    %88 = vmatprep.subr.mxu0 0.0
    %89 = vmatpush1.msra.mxu0 %v65
    %90 = vmatprep.subr.mxu0 0.0
    %91 = vmatpush1.msra.mxu0 %v66
    %92 = vmatprep.subr.mxu0 0.0
    %93 = vmatpush1.msra.mxu0 %v67
    %94 = vmatprep.subr.mxu0 0.0
    %95 = vmatpush1.msra.mxu0 %v68
    %96 = vmatprep.subr.mxu0 0.0
    %97 = vmatpush1.msra.mxu0 %v69
    %98 = vmatprep.subr.mxu0 0.0
    %99 = vmatpush1.msra.mxu0 %v70
    %100 = vmatprep.subr.mxu0 0.0
    %101 = vmatpush1.msra.mxu0 %v71
    %102 = vmatprep.subr.mxu0 0.0
    %103 = vmatpush1.msra.mxu0 %v72
    %104 = vmatprep.subr.mxu0 0.0
    %105 = vmatpush1.msra.mxu0 %v73
    %106 = vmatprep.subr.mxu0 0.0
    %107 = vmatpush1.msra.mxu0 0.0
    %108 = vmatprep.subr.mxu0 0.0
    %109 = vmatpush1.msra.mxu0 0.0
    %110 = vmatprep.subr.mxu0 0.0
    %111 = vmatpush1.msra.mxu0 0.0
    %112 = vmatprep.subr.mxu0 0.0
    %113 = vmatpush1.msra.mxu0 0.0
    %114 = vmatprep.subr.mxu0 0.0
    %115 = vmatpush1.msra.mxu0 0.0
    %116 = vmatprep.subr.mxu0 0.0
    %117 = vmatpush1.msra.mxu0 0.0
    %118 = vmatprep.subr.mxu0 0.0
    %119 = vmatpush1.msra.mxu0 0.0
    %120 = vmatprep.subr.mxu0 0.0
    %121 = vmatpush1.msra.mxu0 0.0
    %122 = vmatprep.subr.mxu0 0.0
    %123 = vmatpush1.msra.mxu0 0.0
    %124 = vmatprep.subr.mxu0 0.0
    %125 = vmatpush1.msra.mxu0 0.0
    %126 = vmatprep.subr.mxu0 0.0
    %127 = vmatpush1.msra.mxu0 0.0
    %128 = vmatprep.subr.mxu0 0.0
    %129 = vmatpush1.msra.mxu0 0.0
    %130 = vmatprep.subr.mxu0 0.0
    %131 = vmatpush1.msra.mxu0 0.0
    %132 = vmatprep.subr.mxu0 0.0
    %133 = vmatpush1.msra.mxu0 0.0
    %134 = vmatprep.subr.mxu0 0.0
    %135 = vmatpush1.msra.mxu0 0.0
    %136 = vmatprep.subr.mxu0 0.0
    %137 = vmatpush1.msra.mxu0 0.0
    %138 = vmatprep.mubr.f32.mxu0 0.0
    %139 = vmatmul.mubr.f32.gmra.mrb[0].mxu0 %v56
    %v140 = vpop.f32.mrb[0].mxu0
    %v141 = vadd.f32 0.0, %v140
    %v142 = vpop.f32.mrb[0].mxu0
    %143 = vmatprep.mubr.f32.mxu0 0.0
    %144 = vmatmul.mubr.f32.gmra.mrb[0].mxu0 %v57
    %v145 = vpop.f32.mrb[0].mxu0
    %v146 = vadd.f32 0.0, %v145
    %v147 = vpop.f32.mrb[0].mxu0
    %148 = vdwg.mxu0
    %v149 = vxor.u32 %v141, 2147483648
    %v150 = vxor.u32 %v146, 2147483648
    %v151 = vmul.f32 %v149, 1.442695
    %v152 = vpow.pop %v151
    %v153 = vmul.f32 %v150, 1.442695
    %v154 = vpow.pop %v153
    %v155 = vadd.f32 %v152, 1.0
    %v156 = vadd.f32 %v154, 1.0
    %v157 = vrcp.pop %v155
    %v158 = vmul.f32 1.0, %v157
    %v159 = vrcp.pop %v156
    %v160 = vmul.f32 1.0, %v159
    %v161 = vmul.f32 %v141, %v158
    %v162 = vmul.f32 %v146, %v160
    %v163 = vld [vmem:[#allocation7] sm:$0xff]
    %v164 = vld [vmem:[#allocation7 + $0x8] sm:$0xff]
    %v165 = vld [vmem:[#allocation7 + $0x10] sm:$0xff]
    %v166 = vld [vmem:[#allocation7 + $0x18] sm:$0xff]
    %v167 = vld [vmem:[#allocation7 + $0x20] sm:$0xff]
    %v168 = vld [vmem:[#allocation7 + $0x28] sm:$0xff]
    %v169 = vld [vmem:[#allocation7 + $0x30] sm:$0xff]
    %v170 = vld [vmem:[#allocation7 + $0x38] sm:$0xff]
    %v171 = vld [vmem:[#allocation7 + $0x40] sm:$0xff]
    %v172 = vld [vmem:[#allocation7 + $0x48] sm:$0xff]
    %v173 = vld [vmem:[#allocation7 + $0x50] sm:$0xff]
    %v174 = vld [vmem:[#allocation7 + $0x58] sm:$0xff]
    %v175 = vld [vmem:[#allocation7 + $0x60] sm:$0xff]
    %v176 = vld [vmem:[#allocation7 + $0x68] sm:$0xff]
    %v177 = vld [vmem:[#allocation7 + $0x70] sm:$0xff]
    %v178 = vld [vmem:[#allocation7 + $0x78] sm:$0xff]
    %179 = vmatprep.subr.mxu0 0.0
    %180 = vmatpush1.msra.mxu0 %v163
    %181 = vmatprep.subr.mxu0 0.0
    %182 = vmatpush1.msra.mxu0 %v164
    %183 = vmatprep.subr.mxu0 0.0
    %184 = vmatpush1.msra.mxu0 %v165
    %185 = vmatprep.subr.mxu0 0.0
    %186 = vmatpush1.msra.mxu0 %v166
    %187 = vmatprep.subr.mxu0 0.0
    %188 = vmatpush1.msra.mxu0 %v167
    %189 = vmatprep.subr.mxu0 0.0
    %190 = vmatpush1.msra.mxu0 %v168
    %191 = vmatprep.subr.mxu0 0.0
    %192 = vmatpush1.msra.mxu0 %v169
    %193 = vmatprep.subr.mxu0 0.0
    %194 = vmatpush1.msra.mxu0 %v170
    %195 = vmatprep.subr.mxu0 0.0
    %196 = vmatpush1.msra.mxu0 %v171
    %197 = vmatprep.subr.mxu0 0.0
    %198 = vmatpush1.msra.mxu0 %v172
    %199 = vmatprep.subr.mxu0 0.0
    %200 = vmatpush1.msra.mxu0 %v173
    %201 = vmatprep.subr.mxu0 0.0
    %202 = vmatpush1.msra.mxu0 %v174
    %203 = vmatprep.subr.mxu0 0.0
    %204 = vmatpush1.msra.mxu0 %v175
    %205 = vmatprep.subr.mxu0 0.0
    %206 = vmatpush1.msra.mxu0 %v176
    %207 = vmatprep.subr.mxu0 0.0
    %208 = vmatpush1.msra.mxu0 %v177
    %209 = vmatprep.subr.mxu0 0.0
    %210 = vmatpush1.msra.mxu0 %v178
    %211 = vmatprep.subr.mxu0 0.0
    %212 = vmatpush1.msra.mxu0 0.0
    %213 = vmatprep.subr.mxu0 0.0
    %214 = vmatpush1.msra.mxu0 0.0
    %215 = vmatprep.subr.mxu0 0.0
    %216 = vmatpush1.msra.mxu0 0.0
    %217 = vmatprep.subr.mxu0 0.0
    %218 = vmatpush1.msra.mxu0 0.0
    %219 = vmatprep.subr.mxu0 0.0
    %220 = vmatpush1.msra.mxu0 0.0
    %221 = vmatprep.subr.mxu0 0.0
    %222 = vmatpush1.msra.mxu0 0.0
    %223 = vmatprep.subr.mxu0 0.0
    %224 = vmatpush1.msra.mxu0 0.0
    %225 = vmatprep.subr.mxu0 0.0
    %226 = vmatpush1.msra.mxu0 0.0
    %227 = vmatprep.subr.mxu0 0.0
    %228 = vmatpush1.msra.mxu0 0.0
    %229 = vmatprep.subr.mxu0 0.0
    %230 = vmatpush1.msra.mxu0 0.0
    %231 = vmatprep.subr.mxu0 0.0
    %232 = vmatpush1.msra.mxu0 0.0
    %233 = vmatprep.subr.mxu0 0.0
    %234 = vmatpush1.msra.mxu0 0.0
    %235 = vmatprep.subr.mxu0 0.0
    %236 = vmatpush1.msra.mxu0 0.0
    %237 = vmatprep.subr.mxu0 0.0
    %238 = vmatpush1.msra.mxu0 0.0
    %239 = vmatprep.subr.mxu0 0.0
    %240 = vmatpush1.msra.mxu0 0.0
    %241 = vmatprep.subr.mxu0 0.0
    %242 = vmatpush1.msra.mxu0 0.0
    %243 = vmatprep.mubr.f32.mxu0 0.0
    %244 = vmatmul.mubr.f32.gmra.mrb[0].mxu0 %v161
    %v245 = vpop.f32.mrb[0].mxu0
    %v246 = vadd.f32 0.0, %v245
    %v247 = vpop.f32.mrb[0].mxu0
    %248 = vmatprep.mubr.f32.mxu0 0.0
    %249 = vmatmul.mubr.f32.gmra.mrb[0].mxu0 %v162
    %v250 = vpop.f32.mrb[0].mxu0
    %v251 = vadd.f32 0.0, %v250
    %v252 = vpop.f32.mrb[0].mxu0
    %253 = vdwg.mxu0
    %254 = vst [vmem:[#allocation8] sm:$0xff] %v246
    %255 = vst [vmem:[#allocation8 + $0x8] sm:$0xff] %v251
    // Predicated region
    $region26: #{tpu_custom_call.1} parent=1 // pred_check
      _
    $region27: #{tpu_custom_call.1} parent=1 // pred_check_branch
      %257 = sbr.rel (0) target = $region29
    $region28: #{tpu_custom_call.1} parent=1 // pred_region
      %s259 = ssub.s32 256, 256
      %260 = vsyncadd [#allocation4], %s259
      %s261 = sshll.u32 [#allocation8], 4
      %s262 = int_to_ptr.vmem [resolvable:$true] %s261
      %267 = dma.vmem_to_hbm [thread:$0]  %s262, 256, %s3, [#allocation4], 128, 128, 8
    $region29: #{tpu_custom_call.1} parent=1 // pred_fallthru
      _
    // Predicated region
    $region30: #{tpu_custom_call.1} parent=1 // pred_check
      _
    $region31: #{tpu_custom_call.1} parent=1 // pred_check_branch
      %269 = sbr.rel (0) target = $region33
    $region32: #{tpu_custom_call.1} parent=1 // pred_region
      %270 = dma.done [#allocation4], 256
    $region33: #{tpu_custom_call.1} parent=1 // pred_fallthru
      _
    %271 = vsyncpa [#allocation3], 1
    %272 = vsyncpa [#allocation6], 1
    %273 = vsyncpa [#allocation4], 1

</llo_original>
